<compile_context>
chip_gen: v5e
topology: v5e:2x2
jax: 0.10.0
libtpu: 0.0.40
codegen_flags: <defaults>
</compile_context>

<pallas_src>
import functools

import jax
import jax.numpy as jnp
from jax.experimental import pallas as pl
from jax.experimental.pallas import tpu as pltpu


def _choose_tile(dim, target, align):
    """Largest tile <= target that divides `dim` and is a multiple of `align`,
    falling back to the full dimension (always legal as a full-dim block)."""
    if dim <= target:
        return dim
    t = (target // align) * align
    while t >= align:
        if dim % t == 0:
            return t
        t -= align
    return dim


_VMEM_LIMIT = 32 * 1024 * 1024  # explicit scoped limit; safe on v5e/v6e/v7x


# ----------------------------------------------------------------------------
# Kernel 1: fused knn.
#   scores[n, m] = 2 * x_n . x_m - ||x_m||^2      (== pd[n, m] + ||x_n||^2,
#   same per-row ordering as the PyTorch pairwise_distance), then in-kernel
#   top-k over m.  Output: neighbor indices (TM, k) int32.
# ----------------------------------------------------------------------------
def _knn_kernel(xt_ref, x_ref, nc_ref, idx_ref, scores_ref, *, k):
    # xt_ref: (TM, C) row points   x_ref: (C, N) all points
    # nc_ref: (1, N) column squared norms
    # idx_ref: (TM, k) int32 out   scores_ref: (TM, N) f32 VMEM scratch
    n_cols = x_ref.shape[1]
    scores_ref[...] = (
        2.0 * jnp.dot(xt_ref[...], x_ref[...],
                      preferred_element_type=jnp.float32)   # MXU
        - nc_ref[...]                                       # VPU broadcast
    )
    colf = jax.lax.broadcasted_iota(
        jnp.int32, scores_ref.shape, 1).astype(jnp.float32)  # column ids

    picks = []
    for _ in range(k):                       # k is small & static: unrolled
        s = scores_ref[...]
        m = jnp.max(s, axis=-1, keepdims=True)               # row max (XLU)
        # smallest column index among the maxima (same tie-break as top_k)
        sel = jnp.min(jnp.where(s == m, colf, jnp.float32(n_cols)),
                      axis=-1, keepdims=True)                 # (TM, 1)
        picks.append(sel)
        scores_ref[...] = jnp.where(colf == sel, -jnp.inf, s)  # knock it out

    idx_ref[...] = jnp.concatenate(picks, axis=-1).astype(jnp.int32)


def knn_indices(x_t, x, xx_col, k, *, row_tile_target=256):
    """x_t: (B, N, C), x: (B, C, N), xx_col: (B, 1, N).  Returns (B, N, k) i32."""
    B, N, C = x_t.shape
    assert k <= N
    TM = _choose_tile(N, row_tile_target, 8)
    kernel = functools.partial(_knn_kernel, k=k)
    return pl.pallas_call(
        kernel,
        out_shape=jax.ShapeDtypeStruct((B, N, k), jnp.int32),
        grid=(B, N // TM),
        in_specs=[
            pl.BlockSpec((None, TM, C), lambda b, i: (b, i, 0)),   # row points
            pl.BlockSpec((None, C, N), lambda b, i: (b, 0, 0)),    # all points
            pl.BlockSpec((None, 1, N), lambda b, i: (b, 0, 0)),    # col norms
        ],
        out_specs=pl.BlockSpec((None, TM, k), lambda b, i: (b, i, 0)),
        scratch_shapes=[pltpu.VMEM((TM, N), jnp.float32)],
        compiler_params=pltpu.CompilerParams(
            dimension_semantics=("parallel", "parallel"),
            vmem_limit_bytes=_VMEM_LIMIT,
        ),
    )(x_t, x, xx_col)


# ----------------------------------------------------------------------------
# Kernel 2: fused neighbor gather + 1x1 conv + LeakyReLU + max over k.
#   idx_ref:  (k, TN) int32    xfull_ref: (C, N) bf16    xtile_ref: (C, TN)
#   w1_ref:   (Cout, C) bf16   wc_ref:    (Cout, C) bf16 (= W2 - W1)
#   out_ref:  (Cout, TN) f32
# ----------------------------------------------------------------------------
def _gather_conv_max_kernel(idx_ref, xfull_ref, xtile_ref, w1_ref, wc_ref,
                            out_ref, *, slope, k):
    n_cols = xfull_ref.shape[1]
    tn = out_ref.shape[1]

    # 1x1 conv commutes with the gather: project all points once per step.
    p1 = jnp.dot(w1_ref[...], xfull_ref[...],
                 preferred_element_type=jnp.float32).astype(jnp.bfloat16)
    center = jnp.dot(wc_ref[...], xtile_ref[...],
                     preferred_element_type=jnp.float32)          # (Cout, TN)

    row_ids = jax.lax.broadcasted_iota(jnp.int32, (n_cols, tn), 0)
    acc = jnp.full(center.shape, -jnp.inf, dtype=jnp.float32)
    one = jnp.bfloat16(1.0)
    zero = jnp.bfloat16(0.0)

    for j in range(k):                        # small static k: unrolled
        sel = idx_ref[pl.ds(j, 1), :]                              # (1, TN)
        onehot = jnp.where(row_ids == sel, one, zero)              # (N, TN)
        # MXU gather + conv: (Cout, N) @ (N, TN) selects neighbor columns.
        y = jnp.dot(p1, onehot, preferred_element_type=jnp.float32) + center
        y = jnp.where(y > 0, y, slope * y)                         # LeakyReLU
        acc = jnp.maximum(acc, y)                                  # max over k

    out_ref[...] = acc.astype(out_ref.dtype)


def gather_conv_lrelu_max(idx_t, x, w1, wc, *, slope, tile_target=512):
    """idx_t: (B, k, N) i32, x: (B, C, N) bf16, w1/wc: (Cout, C) bf16
    -> (B, Cout, N) f32."""
    B, k, N = idx_t.shape
    C = x.shape[1]
    Cout = w1.shape[0]
    TN = _choose_tile(N, tile_target, 128)
    kernel = functools.partial(_gather_conv_max_kernel, slope=slope, k=k)
    return pl.pallas_call(
        kernel,
        out_shape=jax.ShapeDtypeStruct((B, Cout, N), jnp.float32),
        grid=(B, N // TN),
        in_specs=[
            pl.BlockSpec((None, k, TN), lambda b, n: (b, 0, n)),   # idx tile
            pl.BlockSpec((None, C, N), lambda b, n: (b, 0, 0)),    # gather src
            pl.BlockSpec((None, C, TN), lambda b, n: (b, 0, n)),   # center tile
            pl.BlockSpec((Cout, C), lambda b, n: (0, 0)),          # W1
            pl.BlockSpec((Cout, C), lambda b, n: (0, 0)),          # W2 - W1
        ],
        out_specs=pl.BlockSpec((None, Cout, TN), lambda b, n: (b, 0, n)),
        compiler_params=pltpu.CompilerParams(
            dimension_semantics=("parallel", "parallel"),
            vmem_limit_bytes=_VMEM_LIMIT,
        ),
    )(idx_t, x, x, w1, wc)


# ----------------------------------------------------------------------------
# GCM_Block forward (use_batch_norm=False path)
# ----------------------------------------------------------------------------
def gcm_block_forward(x, conv_weight, k, leakyrelu_slope=0.01):
    """x: (B, C, N).  conv_weight: (Cout, 2C) (squeezed 1x1 Conv2d weight).
    Returns (B, Cout, N), matching PyTorch GCM_Block.forward."""
    B, C, N = x.shape
    x = x.astype(jnp.float32)

    # --- fused knn (Pallas): indices only, no (B, N, N) materialization ---
    x_t = jnp.transpose(x, (0, 2, 1))             # (B, N, C)  (tiny)
    xx = jnp.sum(x * x, axis=1).reshape(B, 1, N)  # (B, 1, N)
    idx = knn_indices(x_t, x, xx, k)              # (B, N, k) int32
    idx_t = jnp.transpose(idx, (0, 2, 1))         # (B, k, N)  (tiny int array)

    # --- weight split: W @ [neigh - c, c] = W1 @ neigh + (W2 - W1) @ c ---
    w = conv_weight.astype(jnp.float32)           # (Cout, 2C)
    w1 = w[:, :C]
    wc = w[:, C:] - w1

    # --- fused gather + conv + LeakyReLU + max (Pallas), bf16 streaming ---
    return gather_conv_lrelu_max(
        idx_t,
        x.astype(jnp.bfloat16),
        w1.astype(jnp.bfloat16),
        wc.astype(jnp.bfloat16),
        slope=leakyrelu_slope,
    )


# ----------------------------------------------------------------------------
# Pure-JAX reference (same semantics as the PyTorch module) for a sanity check
# ----------------------------------------------------------------------------
def gcm_block_reference(x, conv_weight, k, slope=0.01):
    inner = -2.0 * jnp.einsum("bcn,bcm->bnm", x, x)
    xx = jnp.sum(x * x, axis=1, keepdims=True)                    # (B, 1, N)
    pd = -xx - inner - jnp.transpose(xx, (0, 2, 1))
    idx = jax.lax.top_k(pd, k)[1]
    x_t = jnp.transpose(x, (0, 2, 1))
    neigh = jax.vmap(lambda xt, id_: xt[id_])(x_t, idx)           # (B, N, k, C)
    center = jnp.broadcast_to(x_t[:, :, None, :], neigh.shape)
    feat = jnp.concatenate([neigh - center, center], axis=-1)     # (B, N, k, 2C)
    y = jnp.einsum("bnkc,oc->bnko", feat, conv_weight)
    y = jnp.where(y > 0, y, slope * y)
    return jnp.transpose(jnp.max(y, axis=2), (0, 2, 1))           # (B, Cout, N)


if __name__ == "__main__":
    # Small shapes consistent with GCM_Block(k, input_dim, output_dim)
    B, C, N = 2, 4, 16          # input_dim = 4, num_points = 16
    K = 4                       # neighbors
    COUT = 8                    # output_dim

    key = jax.random.PRNGKey(0)
    kx, kw = jax.random.split(key)
    x = jax.random.normal(kx, (B, C, N), dtype=jnp.float32)
    # Conv2d(2*input_dim, output_dim, kernel_size=1, bias=False) weight (squeezed)
    conv_w = 0.1 * jax.random.normal(kw, (COUT, 2 * C), dtype=jnp.float32)

    out = gcm_block_forward(x, conv_w, k=K, leakyrelu_slope=0.01)
    out = jax.block_until_ready(out)

    ref = gcm_block_reference(x, conv_w, k=K, slope=0.01)
    assert out.shape == (B, COUT, N), out.shape
    err = float(jnp.max(jnp.abs(out - ref)))
    # bf16 streaming in kernel 2 -> relaxed tolerance (kNN / top-k stays f32).
    assert jnp.allclose(out, ref, atol=2e-2, rtol=2e-2), err

    print("KERNEL_OK")
</pallas_src>

<mosaic_0001>
module attributes {stable_mosaic.version = 11 : i64} {
  func.func @_knn_kernel(%arg0: i32, %arg1: i32, %arg2: memref<1x16x4xf32, #tpu.memory_space<vmem>>, %arg3: memref<1x4x16xf32, #tpu.memory_space<vmem>>, %arg4: memref<1x1x16xf32, #tpu.memory_space<vmem>>, %arg5: memref<1x16x4xi32, #tpu.memory_space<vmem>>, %arg6: memref<16x16xf32, #tpu.memory_space<vmem>>) attributes {dimension_semantics = [#tpu.dimension_semantics<parallel>, #tpu.dimension_semantics<parallel>], iteration_bounds = array<i64: 2, 1>, scalar_prefetch = 0 : i64, scratch_operands = 1 : i64, tpu.core_type = #tpu.core_type<tc>, window_params = [{transform_indices = @transform_0, window_bounds = array<i64: 1, 16, 4>}, {transform_indices = @transform_1, window_bounds = array<i64: 1, 4, 16>}, {transform_indices = @transform_2, window_bounds = array<i64: 1, 1, 16>}, {transform_indices = @transform_3, window_bounds = array<i64: 1, 16, 4>}]} {
    %c0 = arith.constant 0 : index
    %c0_0 = arith.constant 0 : index
    %c0_1 = arith.constant 0 : index
    %0 = vector.load %arg2[%c0, %c0_0, %c0_1] : memref<1x16x4xf32, #tpu.memory_space<vmem>>, vector<1x16x4xf32>
    %1 = vector.shape_cast %0 : vector<1x16x4xf32> to vector<16x4xf32>
    %c0_2 = arith.constant 0 : index
    %c0_3 = arith.constant 0 : index
    %c0_4 = arith.constant 0 : index
    %2 = vector.load %arg3[%c0_2, %c0_3, %c0_4] : memref<1x4x16xf32, #tpu.memory_space<vmem>>, vector<1x4x16xf32>
    %3 = vector.shape_cast %2 : vector<1x4x16xf32> to vector<4x16xf32>
    %cst = arith.constant dense<0.000000e+00> : vector<16x16xf32>
    %4 = tpu.matmul %1, %3, %cst {dimension_numbers = #tpu.dot_dimension_numbers<[1], [0], [0], [1], [0, 0, 1, 1], [], []>} : vector<16x4xf32>, vector<4x16xf32>, vector<16x16xf32> -> vector<16x16xf32>
    %cst_5 = arith.constant 2.000000e+00 : f32
    %5 = vector.broadcast %cst_5 : f32 to vector<16x16xf32>
    %6 = arith.mulf %5, %4 : vector<16x16xf32>
    %c0_6 = arith.constant 0 : index
    %c0_7 = arith.constant 0 : index
    %c0_8 = arith.constant 0 : index
    %7 = vector.load %arg4[%c0_6, %c0_7, %c0_8] : memref<1x1x16xf32, #tpu.memory_space<vmem>>, vector<1x1x16xf32>
    %8 = vector.shape_cast %7 : vector<1x1x16xf32> to vector<1x16xf32>
    %9 = vector.broadcast %8 : vector<1x16xf32> to vector<16x16xf32>
    %10 = arith.subf %6, %9 : vector<16x16xf32>
    %c0_9 = arith.constant 0 : index
    %c0_10 = arith.constant 0 : index
    %11 = vector.load %arg6[%c0_9, %c0_10] : memref<16x16xf32, #tpu.memory_space<vmem>>, vector<16x16xf32>
    tpu.vector_store %arg6[%c0_9, %c0_10], %10 {strides = array<i32>} : memref<16x16xf32, #tpu.memory_space<vmem>>, vector<16x16xf32>,
    %12 = tpu.iota {dimensions = array<i32: 1>} : vector<16x16xi32>
    %13 = arith.sitofp %12 : vector<16x16xi32> to vector<16x16xf32>
    %c0_11 = arith.constant 0 : index
    %c0_12 = arith.constant 0 : index
    %14 = vector.load %arg6[%c0_11, %c0_12] : memref<16x16xf32, #tpu.memory_space<vmem>>, vector<16x16xf32>
    %cst_13 = arith.constant dense<0xFF800000> : vector<16xf32>
    %15 = vector.multi_reduction <maximumf>, %14, %cst_13 [1] : vector<16x16xf32> to vector<16xf32>
    %16 = vector.shape_cast %15 : vector<16xf32> to vector<16x1xf32>
    %17 = vector.broadcast %16 : vector<16x1xf32> to vector<16x16xf32>
    %18 = arith.cmpf oeq, %14, %17 : vector<16x16xf32>
    %cst_14 = arith.constant 1.600000e+01 : f32
    %19 = vector.broadcast %cst_14 : f32 to vector<16x16xf32>
    %20 = arith.select %18, %13, %19 : vector<16x16xi1>, vector<16x16xf32>
    %cst_15 = arith.constant dense<0x7F800000> : vector<16xf32>
    %21 = vector.multi_reduction <minimumf>, %20, %cst_15 [1] : vector<16x16xf32> to vector<16xf32>
    %22 = vector.shape_cast %21 : vector<16xf32> to vector<16x1xf32>
    %23 = vector.broadcast %22 : vector<16x1xf32> to vector<16x16xf32>
    %24 = arith.cmpf oeq, %13, %23 : vector<16x16xf32>
    %cst_16 = arith.constant 0xFF800000 : f32
    %25 = vector.broadcast %cst_16 : f32 to vector<16x16xf32>
    %26 = arith.select %24, %25, %14 : vector<16x16xi1>, vector<16x16xf32>
    %c0_17 = arith.constant 0 : index
    %c0_18 = arith.constant 0 : index
    %27 = vector.load %arg6[%c0_17, %c0_18] : memref<16x16xf32, #tpu.memory_space<vmem>>, vector<16x16xf32>
    tpu.vector_store %arg6[%c0_17, %c0_18], %26 {strides = array<i32>} : memref<16x16xf32, #tpu.memory_space<vmem>>, vector<16x16xf32>,
    %c0_19 = arith.constant 0 : index
    %c0_20 = arith.constant 0 : index
    %28 = vector.load %arg6[%c0_19, %c0_20] : memref<16x16xf32, #tpu.memory_space<vmem>>, vector<16x16xf32>
    %cst_21 = arith.constant dense<0xFF800000> : vector<16xf32>
    %29 = vector.multi_reduction <maximumf>, %28, %cst_21 [1] : vector<16x16xf32> to vector<16xf32>
    %30 = vector.shape_cast %29 : vector<16xf32> to vector<16x1xf32>
    %31 = vector.broadcast %30 : vector<16x1xf32> to vector<16x16xf32>
    %32 = arith.cmpf oeq, %28, %31 : vector<16x16xf32>
    %cst_22 = arith.constant 1.600000e+01 : f32
    %33 = vector.broadcast %cst_22 : f32 to vector<16x16xf32>
    %34 = arith.select %32, %13, %33 : vector<16x16xi1>, vector<16x16xf32>
    %cst_23 = arith.constant dense<0x7F800000> : vector<16xf32>
    %35 = vector.multi_reduction <minimumf>, %34, %cst_23 [1] : vector<16x16xf32> to vector<16xf32>
    %36 = vector.shape_cast %35 : vector<16xf32> to vector<16x1xf32>
    %37 = vector.broadcast %36 : vector<16x1xf32> to vector<16x16xf32>
    %38 = arith.cmpf oeq, %13, %37 : vector<16x16xf32>
    %cst_24 = arith.constant 0xFF800000 : f32
    %39 = vector.broadcast %cst_24 : f32 to vector<16x16xf32>
    %40 = arith.select %38, %39, %28 : vector<16x16xi1>, vector<16x16xf32>
    %c0_25 = arith.constant 0 : index
    %c0_26 = arith.constant 0 : index
    %41 = vector.load %arg6[%c0_25, %c0_26] : memref<16x16xf32, #tpu.memory_space<vmem>>, vector<16x16xf32>
    tpu.vector_store %arg6[%c0_25, %c0_26], %40 {strides = array<i32>} : memref<16x16xf32, #tpu.memory_space<vmem>>, vector<16x16xf32>,
    %c0_27 = arith.constant 0 : index
    %c0_28 = arith.constant 0 : index
    %42 = vector.load %arg6[%c0_27, %c0_28] : memref<16x16xf32, #tpu.memory_space<vmem>>, vector<16x16xf32>
    %cst_29 = arith.constant dense<0xFF800000> : vector<16xf32>
    %43 = vector.multi_reduction <maximumf>, %42, %cst_29 [1] : vector<16x16xf32> to vector<16xf32>
    %44 = vector.shape_cast %43 : vector<16xf32> to vector<16x1xf32>
    %45 = vector.broadcast %44 : vector<16x1xf32> to vector<16x16xf32>
    %46 = arith.cmpf oeq, %42, %45 : vector<16x16xf32>
    %cst_30 = arith.constant 1.600000e+01 : f32
    %47 = vector.broadcast %cst_30 : f32 to vector<16x16xf32>
    %48 = arith.select %46, %13, %47 : vector<16x16xi1>, vector<16x16xf32>
    %cst_31 = arith.constant dense<0x7F800000> : vector<16xf32>
    %49 = vector.multi_reduction <minimumf>, %48, %cst_31 [1] : vector<16x16xf32> to vector<16xf32>
    %50 = vector.shape_cast %49 : vector<16xf32> to vector<16x1xf32>
    %51 = vector.broadcast %50 : vector<16x1xf32> to vector<16x16xf32>
    %52 = arith.cmpf oeq, %13, %51 : vector<16x16xf32>
    %cst_32 = arith.constant 0xFF800000 : f32
    %53 = vector.broadcast %cst_32 : f32 to vector<16x16xf32>
    %54 = arith.select %52, %53, %42 : vector<16x16xi1>, vector<16x16xf32>
    %c0_33 = arith.constant 0 : index
    %c0_34 = arith.constant 0 : index
    %55 = vector.load %arg6[%c0_33, %c0_34] : memref<16x16xf32, #tpu.memory_space<vmem>>, vector<16x16xf32>
    tpu.vector_store %arg6[%c0_33, %c0_34], %54 {strides = array<i32>} : memref<16x16xf32, #tpu.memory_space<vmem>>, vector<16x16xf32>,
    %c0_35 = arith.constant 0 : index
    %c0_36 = arith.constant 0 : index
    %56 = vector.load %arg6[%c0_35, %c0_36] : memref<16x16xf32, #tpu.memory_space<vmem>>, vector<16x16xf32>
    %cst_37 = arith.constant dense<0xFF800000> : vector<16xf32>
    %57 = vector.multi_reduction <maximumf>, %56, %cst_37 [1] : vector<16x16xf32> to vector<16xf32>
    %58 = vector.shape_cast %57 : vector<16xf32> to vector<16x1xf32>
    %59 = vector.broadcast %58 : vector<16x1xf32> to vector<16x16xf32>
    %60 = arith.cmpf oeq, %56, %59 : vector<16x16xf32>
    %cst_38 = arith.constant 1.600000e+01 : f32
    %61 = vector.broadcast %cst_38 : f32 to vector<16x16xf32>
    %62 = arith.select %60, %13, %61 : vector<16x16xi1>, vector<16x16xf32>
    %cst_39 = arith.constant dense<0x7F800000> : vector<16xf32>
    %63 = vector.multi_reduction <minimumf>, %62, %cst_39 [1] : vector<16x16xf32> to vector<16xf32>
    %64 = vector.shape_cast %63 : vector<16xf32> to vector<16x1xf32>
    %65 = vector.broadcast %64 : vector<16x1xf32> to vector<16x16xf32>
    %66 = arith.cmpf oeq, %13, %65 : vector<16x16xf32>
    %cst_40 = arith.constant 0xFF800000 : f32
    %67 = vector.broadcast %cst_40 : f32 to vector<16x16xf32>
    %68 = arith.select %66, %67, %56 : vector<16x16xi1>, vector<16x16xf32>
    %c0_41 = arith.constant 0 : index
    %c0_42 = arith.constant 0 : index
    %69 = vector.load %arg6[%c0_41, %c0_42] : memref<16x16xf32, #tpu.memory_space<vmem>>, vector<16x16xf32>
    tpu.vector_store %arg6[%c0_41, %c0_42], %68 {strides = array<i32>} : memref<16x16xf32, #tpu.memory_space<vmem>>, vector<16x16xf32>,
    %70 = tpu.concatenate %22, %36, %50, %64 in 1 : vector<16x1xf32>, vector<16x1xf32>, vector<16x1xf32>, vector<16x1xf32> -> vector<16x4xf32>
    %71 = arith.fptosi %70 : vector<16x4xf32> to vector<16x4xi32>
    %c0_43 = arith.constant 0 : index
    %c0_44 = arith.constant 0 : index
    %c0_45 = arith.constant 0 : index
    %72 = vector.load %arg5[%c0_43, %c0_44, %c0_45] : memref<1x16x4xi32, #tpu.memory_space<vmem>>, vector<1x16x4xi32>
    %73 = vector.shape_cast %72 : vector<1x16x4xi32> to vector<16x4xi32>
    %74 = vector.shape_cast %71 : vector<16x4xi32> to vector<1x16x4xi32>
    tpu.vector_store %arg5[%c0_43, %c0_44, %c0_45], %74 {strides = array<i32>} : memref<1x16x4xi32, #tpu.memory_space<vmem>>, vector<1x16x4xi32>,
    return
  }
  func.func @transform_0(%arg0: i32, %arg1: i32) -> (i32, i32, i32) {
    %c0_i32 = arith.constant 0 : i32
    %c0_i32_0 = arith.constant 0 : i32
    return %arg0, %arg1, %c0_i32 : i32, i32, i32
  }
  func.func @transform_1(%arg0: i32, %arg1: i32) -> (i32, i32, i32) {
    %c0_i32 = arith.constant 0 : i32
    %c0_i32_0 = arith.constant 0 : i32
    %c0_i32_1 = arith.constant 0 : i32
    return %arg0, %c0_i32, %c0_i32_0 : i32, i32, i32
  }
  func.func @transform_2(%arg0: i32, %arg1: i32) -> (i32, i32, i32) {
    %c0_i32 = arith.constant 0 : i32
    %c0_i32_0 = arith.constant 0 : i32
    %c0_i32_1 = arith.constant 0 : i32
    return %arg0, %c0_i32, %c0_i32_0 : i32, i32, i32
  }
  func.func @transform_3(%arg0: i32, %arg1: i32) -> (i32, i32, i32) {
    %c0_i32 = arith.constant 0 : i32
    %c0_i32_0 = arith.constant 0 : i32
    return %arg0, %arg1, %c0_i32 : i32, i32, i32
  }
}

</mosaic_0001>

<llo_original>
// kernel: tpu_custom_call.1
$region0: #{tpu_custom_call.1}
  #allocation0 [shape = 'u32[]', space=smem, size = 0x4, offset = 0x4, fixed_abs, tag = 'smem constant byte address 0x4 - core index']
  #allocation1 [shape = 'u32[72,128]{1,0:T(1,128)}', space=vmem, size = 0x9000, scoped, tag = 'internal scratch']
  #allocation2 [shape = 'f32[16,16]{1,0:T(8,128)}', space=vmem, size = 0x2000, scoped, tag = 'scratch operand']
  %s0 = inlined_call_operand.vmem [shape: f32[2,16,4], index: 0, kind: input, shape index: {}]
  %s1 = inlined_call_operand.vmem [shape: f32[2,4,16], index: 1, kind: input, shape index: {}]
  %s2 = inlined_call_operand.vmem [shape: f32[2,1,16], index: 2, kind: input, shape index: {}]
  %s3 = inlined_call_operand.vmem [shape: s32[2,16,4], index: 3, kind: output, shape index: {}]
  %s4 = sld [smem:[#allocation0]]
  $region45: #{tpu_custom_call.1} parent=0
    _
  %s6 = ssub.s32 1, %s4
  %s7 = scalar_select 0, %s6, %s4
  loop: start=0, step=1, limit=4
  $region2: #{tpu_custom_call.1} parent=0 // loop_pre_header
    _
  $region3: #{tpu_custom_call.1} parent=0 // loop_header
    %s9 = sphi 0, %s13
    %p10 = scmp.ge.s32.totalorder %s9, 4
    %s16 = sphi 0, %s28
    %s17 = sphi 0, %s24
    %s18 = sphi 0, %s16
    %s19 = sphi 0, %s17
    %s20 = sphi 0, %s18
    %s21 = sphi 0, %s19
    %s33 = sphi 0, %s35
    %s36 = sphi 0, %s33
    %s37 = sphi 0, %s36
    %s53 = sphi 0, %s37
    %s59 = sphi 0, %s61
    %s62 = sphi 0, %s59
    %s63 = sphi 0, %s62
    %s79 = sphi 0, %s63
    %s85 = sphi 0, %s87
    %s88 = sphi 0, %s85
    %s89 = sphi 0, %s88
    %s105 = sphi 0, %s89
    %s113 = sphi 0, %s115
    %s116 = sphi 0, %s113
    %s117 = sphi 0, %s116
    %s133 = sphi 0, %s117
  $region4: #{tpu_custom_call.1} parent=0 // loop_header_branch
    %12 = sbr.rel (%p10) target = $region8
  $region5: #{tpu_custom_call.1} parent=0 // loop_body
    %s14 = ssub.s32 %s9, 1
    %s15 = ssub.s32 %s9, 2
    %s22 = sadd.s32 1, %s17
    %p23 = scmp.ge.s32.totalorder %s22, 1
    %s24 = scalar_select %p23, 0, %s22
    %s25 = sadd.s32 1, %s16
    %s26 = scalar_select %p23, %s25, %s16
    %p27 = scmp.ge.s32.totalorder %s26, 2
    %s28 = scalar_select %p27, 0, %s26
    %s29 = ssub.s32 %s16, %s28
    %s30 = ssub.s32 %s17, %s24
    %s31 = sor.u32 %s29, %s30
    %p32 = scmp.eq.s32.totalorder %s31, 0
    %s34 = sadd.s32 %s33, 1
    %s35 = scalar_select %p32, %s33, %s34
    %p38 = pneg %p32
    %p39 = scmp.eq.s32.totalorder %s9, 1
    %p40 = por %p38, %p39
    %p41 = scmp.ne.s32.totalorder %s33, %s36
    %p42 = scmp.eq.s32.totalorder %s9, 0
    %p43 = por %p41, %p42
    %p44 = scmp.ne.s32.totalorder %s33, %s36
    %p45 = scmp.eq.s32.totalorder %s14, 1
    %p46 = por %p44, %p45
    %p47 = scmp.ne.s32.totalorder %s36, %s37
    %p48 = scmp.eq.s32.totalorder %s14, 0
    %p49 = por %p47, %p48
    %p50 = scmp.ne.s32.totalorder %s36, %s37
    %p51 = scmp.eq.s32.totalorder %s15, 1
    %p52 = por %p50, %p51
    %p54 = scmp.ne.s32.totalorder %s37, %s53
    %p55 = scmp.eq.s32.totalorder %s15, 0
    %p56 = por %p54, %p55
    %s57 = ssub.s32 %s16, %s28
    %p58 = scmp.eq.s32.totalorder %s57, 0
    %s60 = sadd.s32 %s59, 1
    %s61 = scalar_select %p58, %s59, %s60
    %p64 = pneg %p58
    %p65 = scmp.eq.s32.totalorder %s9, 1
    %p66 = por %p64, %p65
    %p67 = scmp.ne.s32.totalorder %s59, %s62
    %p68 = scmp.eq.s32.totalorder %s9, 0
    %p69 = por %p67, %p68
    %p70 = scmp.ne.s32.totalorder %s59, %s62
    %p71 = scmp.eq.s32.totalorder %s14, 1
    %p72 = por %p70, %p71
    %p73 = scmp.ne.s32.totalorder %s62, %s63
    %p74 = scmp.eq.s32.totalorder %s14, 0
    %p75 = por %p73, %p74
    %p76 = scmp.ne.s32.totalorder %s62, %s63
    %p77 = scmp.eq.s32.totalorder %s15, 1
    %p78 = por %p76, %p77
    %p80 = scmp.ne.s32.totalorder %s63, %s79
    %p81 = scmp.eq.s32.totalorder %s15, 0
    %p82 = por %p80, %p81
    %s83 = ssub.s32 %s16, %s28
    %p84 = scmp.eq.s32.totalorder %s83, 0
    %s86 = sadd.s32 %s85, 1
    %s87 = scalar_select %p84, %s85, %s86
    %p90 = pneg %p84
    %p91 = scmp.eq.s32.totalorder %s9, 1
    %p92 = por %p90, %p91
    %p93 = scmp.ne.s32.totalorder %s85, %s88
    %p94 = scmp.eq.s32.totalorder %s9, 0
    %p95 = por %p93, %p94
    %p96 = scmp.ne.s32.totalorder %s85, %s88
    %p97 = scmp.eq.s32.totalorder %s14, 1
    %p98 = por %p96, %p97
    %p99 = scmp.ne.s32.totalorder %s88, %s89
    %p100 = scmp.eq.s32.totalorder %s14, 0
    %p101 = por %p99, %p100
    %p102 = scmp.ne.s32.totalorder %s88, %s89
    %p103 = scmp.eq.s32.totalorder %s15, 1
    %p104 = por %p102, %p103
    %p106 = scmp.ne.s32.totalorder %s89, %s105
    %p107 = scmp.eq.s32.totalorder %s15, 0
    %p108 = por %p106, %p107
    %s109 = ssub.s32 %s16, %s28
    %s110 = ssub.s32 %s17, %s24
    %s111 = sor.u32 %s109, %s110
    %p112 = scmp.eq.s32.totalorder %s111, 0
    %s114 = sadd.s32 %s113, 1
    %s115 = scalar_select %p112, %s113, %s114
    %p118 = pneg %p112
    %p119 = scmp.eq.s32.totalorder %s9, 1
    %p120 = por %p118, %p119
    %p121 = scmp.ne.s32.totalorder %s113, %s116
    %p122 = scmp.eq.s32.totalorder %s9, 0
    %p123 = por %p121, %p122
    %p124 = scmp.ne.s32.totalorder %s113, %s116
    %p125 = scmp.eq.s32.totalorder %s14, 1
    %p126 = por %p124, %p125
    %p127 = scmp.ne.s32.totalorder %s116, %s117
    %p128 = scmp.eq.s32.totalorder %s14, 0
    %p129 = por %p127, %p128
    %p130 = scmp.ne.s32.totalorder %s116, %s117
    %p131 = scmp.eq.s32.totalorder %s15, 1
    %p132 = por %p130, %p131
    %p134 = scmp.ne.s32.totalorder %s117, %s133
    %p135 = scmp.eq.s32.totalorder %s15, 0
    %p136 = por %p134, %p135
    %p137 = scmp.le.s32.totalorder 1, %s9
    %p138 = scmp.lt.s32.totalorder %s9, 3
    %p139 = pnand %p137, %p138
    %p140 = pneg %p139
    // Predicated region
    $region9: #{tpu_custom_call.1} parent=5 // pred_check
      _
    $region10: #{tpu_custom_call.1} parent=5 // pred_check_branch
      %142 = sbr.rel (%p139) target = $region12
    $region11: #{tpu_custom_call.1} parent=5 // pred_region
      %s143 = ssub.s32 %s9, 1
    $region12: #{tpu_custom_call.1} parent=5 // pred_fallthru
      _
    %p144 = scmp.lt.s32.totalorder %s9, 2
    // Predicated region
    $region13: #{tpu_custom_call.1} parent=5 // pred_check
      %p145 = pneg %p144
    $region14: #{tpu_custom_call.1} parent=5 // pred_check_branch
      %147 = sbr.rel (%p145) target = $region16
    $region15: #{tpu_custom_call.1} parent=5 // pred_region
      // Predicated region
      $region17: #{tpu_custom_call.1} parent=15 // pred_check
        %p148 = pneg %p43
      $region18: #{tpu_custom_call.1} parent=15 // pred_check_branch
        %150 = sbr.rel (%p148) target = $region20
      $region19: #{tpu_custom_call.1} parent=15 // pred_region
        %s151 = smul.u32 2, %s17
        %p152 = scmp.lt.s32.totalorder %s16, 1
        %s153 = scalar_select %p152, %s16, 1
        %p154 = scmp.lt.s32.totalorder %s151, 1
        %s155 = scalar_select %p154, %s151, 1
        %s156 = smul.addr %s153, 2
        %s157 = sadd.s32 %s155, %s156
        %s158 = smul.addr %s157, 8
        %s159 = scalar_lea.vmem %s0, %s158
        %s160 = smul.u32 2, %s17
      $region20: #{tpu_custom_call.1} parent=15 // pred_fallthru
        _
      // Predicated region
      $region21: #{tpu_custom_call.1} parent=15 // pred_check
        %p161 = pneg %p69
      $region22: #{tpu_custom_call.1} parent=15 // pred_check_branch
        %163 = sbr.rel (%p161) target = $region24
      $region23: #{tpu_custom_call.1} parent=15 // pred_region
        %p164 = scmp.lt.s32.totalorder %s16, 1
        %s165 = scalar_select %p164, %s16, 1
        %s166 = smul.addr %s165, 4
        %s167 = scalar_lea.vmem %s1, %s166
      $region24: #{tpu_custom_call.1} parent=15 // pred_fallthru
        _
      // Predicated region
      $region25: #{tpu_custom_call.1} parent=15 // pred_check
        %p168 = pneg %p95
      $region26: #{tpu_custom_call.1} parent=15 // pred_check_branch
        %170 = sbr.rel (%p168) target = $region28
      $region27: #{tpu_custom_call.1} parent=15 // pred_region
        %p171 = scmp.lt.s32.totalorder %s16, 1
        %s172 = scalar_select %p171, %s16, 1
        %s173 = scalar_lea.vmem %s2, %s172
      $region28: #{tpu_custom_call.1} parent=15 // pred_fallthru
        _
    $region16: #{tpu_custom_call.1} parent=5 // pred_fallthru
      _
    %p174 = scmp.le.s32.totalorder 1, %s9
    %p175 = scmp.lt.s32.totalorder %s9, 3
    %p176 = pnand %p174, %p175
    %p177 = pneg %p176
    // Predicated region
    $region29: #{tpu_custom_call.1} parent=5 // pred_check
      _
    $region30: #{tpu_custom_call.1} parent=5 // pred_check_branch
      %179 = sbr.rel (%p176) target = $region32
    $region31: #{tpu_custom_call.1} parent=5 // pred_region
      %s180 = ssub.s32 %s9, 1
      %s181 = smul.u32 2, %s19
      %p182 = scmp.lt.s32.totalorder %s18, 1
      %s183 = scalar_select %p182, %s18, 1
      %p184 = scmp.lt.s32.totalorder %s181, 1
      %s185 = scalar_select %p184, %s181, 1
      %s186 = smul.addr %s183, 2
      %s187 = sadd.s32 %s185, %s186
      %s188 = smul.addr %s187, 8
      %s189 = scalar_lea.vmem %s0, %s188
      %p190 = pneg %p49
      %p191 = pneg %p46
      %p192 = scmp.lt.s32.totalorder %s18, 1
      %s193 = scalar_select %p192, %s18, 1
      %s194 = smul.addr %s193, 4
      %s195 = scalar_lea.vmem %s1, %s194
      %p196 = pneg %p75
      %p197 = pneg %p72
      %p198 = scmp.lt.s32.totalorder %s18, 1
      %s199 = scalar_select %p198, %s18, 1
      %s200 = scalar_lea.vmem %s2, %s199
      %p201 = pneg %p101
      %p202 = pneg %p98
      %p203 = pneg %p129
      %p204 = pneg %p126
      %s205 = smul.u32 2, %s19
      %p206 = scmp.lt.s32.totalorder %s18, 1
      %s207 = scalar_select %p206, %s18, 1
      %p208 = scmp.lt.s32.totalorder %s205, 1
      %s209 = scalar_select %p208, %s205, 1
      %s210 = smul.addr %s207, 2
      %s211 = sadd.s32 %s209, %s210
      %s212 = smul.addr %s211, 8
      %s213 = scalar_lea.vmem %s3, %s212
      %s214 = smul.u32 2, %s19
      %p215 = scmp.lt.s32.totalorder %s18, 1
      %s216 = scalar_select %p215, %s18, 1
      %p217 = scmp.lt.s32.totalorder %s214, 1
      %s218 = scalar_select %p217, %s214, 1
      %s219 = smul.addr %s216, 2
      %s220 = sadd.s32 %s218, %s219
      %s221 = smul.addr %s220, 8
      %s222 = scalar_lea.vmem %s0, %s221
      %s223 = smul.u32 2, %s19
      %p224 = scmp.lt.s32.totalorder %s18, 1
      %s225 = scalar_select %p224, %s18, 1
      %s226 = smul.addr %s225, 4
      %s227 = scalar_lea.vmem %s1, %s226
      %p228 = scmp.lt.s32.totalorder %s18, 1
      %s229 = scalar_select %p228, %s18, 1
      %s230 = scalar_lea.vmem %s2, %s229
      %s231 = smul.u32 2, %s19
      %p232 = scmp.lt.s32.totalorder %s18, 1
      %s233 = scalar_select %p232, %s18, 1
      %p234 = scmp.lt.s32.totalorder %s231, 1
      %s235 = scalar_select %p234, %s231, 1
      %s236 = smul.addr %s233, 2
      %s237 = sadd.s32 %s235, %s236
      %s238 = smul.addr %s237, 8
      %s239 = scalar_lea.vmem %s3, %s238
      %s240 = smul.u32 2, %s19
      %v241 = vld [vmem:[%s222] sm:$0xff]
      %v242 = vld [vmem:[%s222 + $0x8] sm:$0xff]
      %v243 = vld [vmem:[%s227] sm:$0xf]
      %vm244 = vcmask 31744
      %v246 = vsel %vm244, %v241, 0
      %v249 = vsel %vm244, %v242, 0
      %vm251 = vcmask 1043456
      %v253 = vsel %vm251, %v243, 0
      %255 = vmatpush.msra.mxu0 0.0
      %256 = vmatpush.msra.mxu0 0.0
      %257 = vmatpush.msra.mxu0 0.0
      %258 = vmatpush.msra.mxu0 0.0
      %259 = vmatpush.msra.mxu0 0.0
      %260 = vmatpush.msra.mxu0 0.0
      %261 = vmatpush.msra.mxu0 0.0
      %262 = vmatpush.msra.mxu0 0.0
      %263 = vmatpush.msra.mxu0 0.0
      %264 = vmatpush.msra.mxu0 0.0
      %265 = vmatpush.msra.mxu0 0.0
      %266 = vmatpush.msra.mxu0 0.0
      %267 = vmatpush.msra.mxu0 0.0
      %268 = vmatpush.msra.mxu0 0.0
      %269 = vmatpush.msra.mxu0 0.0
      %270 = vmatpush.msra.mxu0 %v253
      %271 = vmatmul.f32.gmra.mxu0 %v246
      %v272 = vpop.f32.mrf.mxu0
      %v273 = vadd.f32 0.0, %v272
      %274 = vmatmul.f32.gmra.mxu0 %v249
      %v275 = vpop.f32.mrf.mxu0
      %v276 = vadd.f32 0.0, %v275
      %277 = vdwg.mxu0
      %v278 = vmul.f32 %v273, 2.0
      %v279 = vmul.f32 %v276, 2.0
      %v280 = vld [vmem:[%s230] sm:$0x1]
      %v282 = vperm.slane %v280, 0
      %v284 = vsub.f32 %v278, %v282
      %v285 = vsub.f32 %v279, %v282
      %vm286 = vcmask 130048
      %287 = vst.msk [vmem:[#allocation2] sm:$0xff] %vm286, %v284
      %288 = vst.msk [vmem:[#allocation2 + $0x8] sm:$0xff] %vm286, %v285
      %v289 = vlaneseq
      %v290 = vand.u32 %v289, 127
      %v291 = vcvt.s32.f32 %v290
      %v292 = vld [vmem:[#allocation2] sm:$0xff]
      %v293 = vld [vmem:[#allocation2 + $0x8] sm:$0xff]
      %v294 = vsel %vm286, %v292, -inf
      %295 = vmax.xlane.f32.xlu0 %v294
      %v296 = vpop.xlane.xlu0 %295
      %v297 = vsel %vm286, %v293, -inf
      %298 = vmax.xlane.f32.xlu0 %v297
      %v299 = vpop.xlane.xlu0 %298
      %vm300 = vcmp.eq.f32.partialorder %v292, %v296
      %vm301 = vcmp.eq.f32.partialorder %v293, %v299
      %v302 = vsel %vm300, %v291, 16.0
      %v303 = vsel %vm301, %v291, 16.0
      %v304 = vsel %vm286, %v302, inf
      %305 = vmin.xlane.f32.xlu0 %v304
      %v306 = vpop.xlane.xlu0 %305
      %v307 = vsel %vm286, %v303, inf
      %308 = vmin.xlane.f32.xlu0 %v307
      %v309 = vpop.xlane.xlu0 %308
      %vm310 = vcmp.eq.f32.partialorder %v291, %v306
      %vm311 = vcmp.eq.f32.partialorder %v291, %v309
      %v312 = vsel %vm310, -inf, %v292
      %v313 = vsel %vm311, -inf, %v293
      %314 = vst.msk [vmem:[#allocation2] sm:$0xff] %vm286, %v312
      %315 = vst.msk [vmem:[#allocation2 + $0x8] sm:$0xff] %vm286, %v313
      %v316 = vld [vmem:[#allocation2] sm:$0xff]
      %v317 = vld [vmem:[#allocation2 + $0x8] sm:$0xff]
      %v318 = vsel %vm286, %v316, -inf
      %319 = vmax.xlane.f32.xlu0 %v318
      %v320 = vpop.xlane.xlu0 %319
      %v321 = vsel %vm286, %v317, -inf
      %322 = vmax.xlane.f32.xlu0 %v321
      %v323 = vpop.xlane.xlu0 %322
      %vm324 = vcmp.eq.f32.partialorder %v316, %v320
      %vm325 = vcmp.eq.f32.partialorder %v317, %v323
      %v326 = vsel %vm324, %v291, 16.0
      %v327 = vsel %vm325, %v291, 16.0
      %v328 = vsel %vm286, %v326, inf
      %329 = vmin.xlane.f32.xlu0 %v328
      %v330 = vpop.xlane.xlu0 %329
      %v331 = vsel %vm286, %v327, inf
      %332 = vmin.xlane.f32.xlu0 %v331
      %v333 = vpop.xlane.xlu0 %332
      %vm334 = vcmp.eq.f32.partialorder %v291, %v330
      %vm335 = vcmp.eq.f32.partialorder %v291, %v333
      %v336 = vsel %vm334, -inf, %v316
      %v337 = vsel %vm335, -inf, %v317
      %338 = vst.msk [vmem:[#allocation2] sm:$0xff] %vm286, %v336
      %339 = vst.msk [vmem:[#allocation2 + $0x8] sm:$0xff] %vm286, %v337
      %v340 = vld [vmem:[#allocation2] sm:$0xff]
      %v341 = vld [vmem:[#allocation2 + $0x8] sm:$0xff]
      %v342 = vsel %vm286, %v340, -inf
      %343 = vmax.xlane.f32.xlu0 %v342
      %v344 = vpop.xlane.xlu0 %343
      %v345 = vsel %vm286, %v341, -inf
      %346 = vmax.xlane.f32.xlu0 %v345
      %v347 = vpop.xlane.xlu0 %346
      %vm348 = vcmp.eq.f32.partialorder %v340, %v344
      %vm349 = vcmp.eq.f32.partialorder %v341, %v347
      %v350 = vsel %vm348, %v291, 16.0
      %v351 = vsel %vm349, %v291, 16.0
      %v352 = vsel %vm286, %v350, inf
      %353 = vmin.xlane.f32.xlu0 %v352
      %v354 = vpop.xlane.xlu0 %353
      %v355 = vsel %vm286, %v351, inf
      %356 = vmin.xlane.f32.xlu0 %v355
      %v357 = vpop.xlane.xlu0 %356
      %vm358 = vcmp.eq.f32.partialorder %v291, %v354
      %vm359 = vcmp.eq.f32.partialorder %v291, %v357
      %v360 = vsel %vm358, -inf, %v340
      %v361 = vsel %vm359, -inf, %v341
      %362 = vst.msk [vmem:[#allocation2] sm:$0xff] %vm286, %v360
      %363 = vst.msk [vmem:[#allocation2 + $0x8] sm:$0xff] %vm286, %v361
      %v364 = vld [vmem:[#allocation2] sm:$0xff]
      %v365 = vld [vmem:[#allocation2 + $0x8] sm:$0xff]
      %v366 = vsel %vm286, %v364, -inf
      %367 = vmax.xlane.f32.xlu0 %v366
      %v368 = vpop.xlane.xlu0 %367
      %v369 = vsel %vm286, %v365, -inf
      %370 = vmax.xlane.f32.xlu0 %v369
      %v371 = vpop.xlane.xlu0 %370
      %vm372 = vcmp.eq.f32.partialorder %v364, %v368
      %vm373 = vcmp.eq.f32.partialorder %v365, %v371
      %v374 = vsel %vm372, %v291, 16.0
      %v375 = vsel %vm373, %v291, 16.0
      %v376 = vsel %vm286, %v374, inf
      %377 = vmin.xlane.f32.xlu0 %v376
      %v378 = vpop.xlane.xlu0 %377
      %v379 = vsel %vm286, %v375, inf
      %380 = vmin.xlane.f32.xlu0 %v379
      %v381 = vpop.xlane.xlu0 %380
      %vm382 = vcmp.eq.f32.partialorder %v291, %v378
      %vm383 = vcmp.eq.f32.partialorder %v291, %v381
      %v384 = vsel %vm382, -inf, %v364
      %v385 = vsel %vm383, -inf, %v365
      %386 = vst.msk [vmem:[#allocation2] sm:$0xff] %vm286, %v384
      %387 = vst.msk [vmem:[#allocation2 + $0x8] sm:$0xff] %vm286, %v385
      %vm388 = vcmask 7168
      %v389 = vsel %vm388, %v306, %v330
      %v390 = vsel %vm388, %v309, %v333
      %vm391 = vcmask 15360
      %v392 = vsel %vm391, %v389, %v354
      %v393 = vsel %vm391, %v390, %v357
      %vm394 = vcmask 23552
      %v395 = vsel %vm394, %v392, %v378
      %v396 = vsel %vm394, %v393, %v381
      %v397 = vcvt.f32.s32.to.zero.pseudo %v395
      %v398 = vcvt.f32.s32.to.zero.pseudo %v396
      %399 = vst.msk [vmem:[%s239] sm:$0xff] %vm244, %v397
      %400 = vst.msk [vmem:[%s239 + $0x8] sm:$0xff] %vm244, %v398
      %s401 = smul.u32 2, %s19
      %p402 = scmp.lt.s32.totalorder %s18, 1
      %s403 = scalar_select %p402, %s18, 1
      %p404 = scmp.lt.s32.totalorder %s401, 1
      %s405 = scalar_select %p404, %s401, 1
      %s406 = smul.addr %s403, 2
      %s407 = sadd.s32 %s405, %s406
      %s408 = smul.addr %s407, 8
      %s409 = scalar_lea.vmem %s3, %s408
      // Predicated region
      $region33: #{tpu_custom_call.1} parent=31 // pred_check
        %p410 = pneg %p126
      $region34: #{tpu_custom_call.1} parent=31 // pred_check_branch
        %412 = sbr.rel (%p410) target = $region36
      $region35: #{tpu_custom_call.1} parent=31 // pred_region
        %s413 = smul.u32 2, %s19
      $region36: #{tpu_custom_call.1} parent=31 // pred_fallthru
        _
    $region32: #{tpu_custom_call.1} parent=5 // pred_fallthru
      _
    %p414 = scmp.le.s32.totalorder 2, %s9
    // Predicated region
    $region37: #{tpu_custom_call.1} parent=5 // pred_check
      %p415 = pneg %p414
    $region38: #{tpu_custom_call.1} parent=5 // pred_check_branch
      %417 = sbr.rel (%p415) target = $region40
    $region39: #{tpu_custom_call.1} parent=5 // pred_region
      %s418 = ssub.s32 %s9, 2
      // Predicated region
      $region41: #{tpu_custom_call.1} parent=39 // pred_check
        %p419 = pneg %p132
      $region42: #{tpu_custom_call.1} parent=39 // pred_check_branch
        %421 = sbr.rel (%p419) target = $region44
      $region43: #{tpu_custom_call.1} parent=39 // pred_region
        %s422 = smul.u32 2, %s21
        %p423 = scmp.lt.s32.totalorder %s20, 1
        %s424 = scalar_select %p423, %s20, 1
        %p425 = scmp.lt.s32.totalorder %s422, 1
        %s426 = scalar_select %p425, %s422, 1
        %s427 = smul.addr %s424, 2
        %s428 = sadd.s32 %s426, %s427
        %s429 = smul.addr %s428, 8
        %s430 = scalar_lea.vmem %s3, %s429
      $region44: #{tpu_custom_call.1} parent=39 // pred_fallthru
        _
    $region40: #{tpu_custom_call.1} parent=5 // pred_fallthru
      _
  $region6: #{tpu_custom_call.1} parent=0 // loop_footer
    %s13 = sadd.s32 1, %s9
  $region7: #{tpu_custom_call.1} parent=0 // loop_footer_branch
    %8 = sbr.rel target = $region3
  $region8: #{tpu_custom_call.1} parent=0 // loop_exit
    _

</llo_original>
